<compile_context>
chip_gen: v5e
topology: v5e:2x2
jax: 0.10.0
libtpu: 0.0.40
codegen_flags: <defaults>
</compile_context>

<pallas_src>
import functools

import jax
import jax.numpy as jnp
from jax.experimental import pallas as pl
from jax.experimental.pallas import tpu as pltpu


def _silu(a):
    # silu(a) = a / (1 + exp(-a)).  exp and the reciprocal estimate issue on the EUP
    # slot (otherwise idle here); one Newton-Raphson step on the VPU restores full
    # f32 accuracy without the multi-op VPU divide sequence jax.nn.silu can lower to.
    d = 1.0 + jnp.exp(jnp.minimum(-a, 80.0))     # clamp: keep d finite so the NR step never NaNs
    r = pl.reciprocal(d, approx=True)
    r = r * (2.0 - d * r)                        # one Newton-Raphson refinement
    return a * r


def _short_conv_kernel(x_ref, w_ref, y_ref, carry_ref, *, W, carry_rows):
    """Causal depthwise conv + silu over one (T-tile, D-tile) slab.

    x_ref:     (tT, tD)          input slab (batch squeezed out)
    w_ref:     (W, tD)           depthwise taps: tap index on sublanes, channel on lanes
    y_ref:     (tT, tD)          silu(causal depthwise conv) output slab
    carry_ref: (carry_rows, tD)  VMEM scratch persisting across the T grid axis: the last
                                 `carry_rows` input rows of the previous T-tile
                                 (zeros on the first tile = causal left padding).

    NOTE: the carried halo is only correct because the T axis is the innermost,
    sequentially iterated ("arbitrary") grid axis.  Do not reorder the grid or mark
    the T axis "parallel".
    """
    tT, tD = y_ref.shape
    t = pl.program_id(2)

    # Causal zero padding for the first T-tile of each (batch, D-tile).
    @pl.when(t == 0)
    def _():
        carry_ref[...] = jnp.zeros_like(carry_ref)

    # Cast once per tile (hoisted out of the tap loop).
    x = x_ref[...].astype(jnp.float32)
    # Read each tap row once as a (1, tD) slab; the sublane splat happens once per
    # multiply instead of re-materializing slices of a preloaded (W, tD) array.
    taps = [w_ref[pl.ds(w, 1), :].astype(jnp.float32) for w in range(W)]

    head_rows = min(tT, carry_rows)              # rows whose inputs reach into the halo

    if W == 1:
        y_ref[...] = _silu(taps[0] * x).astype(y_ref.dtype)
        return

    if tT > head_rows:
        # Bulk of the tile: tap w contributes taps[w] * x[i - (W-1-w)].  The shift is an
        # XLU sublane roll (separate issue slot; aligned operands; no shifted full-tile
        # VMEM copies, no concatenate).  Rows [0, W-1) pick up wrapped garbage and are
        # overwritten by the exact halo fixup below.
        acc = taps[W - 1] * x
        for w in range(W - 1):                   # W is small & static -> unrolled
            acc = acc + taps[w] * pltpu.roll(x, shift=W - 1 - w, axis=0)
        y_ref[...] = _silu(acc).astype(y_ref.dtype)

    # Halo fixup: recompute the first `head_rows` output rows exactly from the carried
    # tail of the previous tile (zeros on t == 0).  This slab is tiny
    # ((W-1+head_rows, tD) ~ tens of KiB), unlike the full-tile concat it replaces.
    halo = carry_ref[pl.ds(carry_rows - (W - 1), W - 1), :].astype(jnp.float32)
    xe = jnp.concatenate([halo, x[:head_rows, :]], axis=0)       # (W-1+head_rows, tD)
    head = taps[0] * xe[:head_rows, :]
    for w in range(1, W):
        head = head + taps[w] * xe[w:w + head_rows, :]
    y_ref[pl.ds(0, head_rows), :] = _silu(head).astype(y_ref.dtype)

    # Carry the tail of this input tile to the next T-tile (sublane-aligned slice + store).
    if tT >= carry_rows:  # if tT < carry_rows the wrapper guarantees there is a single T-tile
        carry_ref[...] = x_ref[pl.ds(tT - carry_rows, carry_rows), :]


def _round_up(n, m):
    return (n + m - 1) // m * m


def _pick_tile(total, target, quantum):
    """Largest divisor of `total` that is a multiple of `quantum` and <= target.

    `total` must be a multiple of `quantum` (callers pad first), so `quantum` is always a
    valid fallback -- there is no full-extent fallback that could blow past v7x's 64 MiB
    VMEM on a large, non-divisible axis."""
    if total <= target:
        return total
    t = (target // quantum) * quantum
    while t > quantum:
        if total % t == 0:
            return t
        t -= quantum
    return quantum


def column_parallel_convolution(x, weight, cache_in=None, *, tile_t=512, tile_d=1024):
    """Forward of ColumnParallelConvolution (tp_size=1), prefill path.

    Args:
      x:        (B, T, D) input, channels-last (ShortConvolution's "b t d" layout).
      weight:   (D, 1, W) depthwise Conv1d weight (PyTorch layout).
      cache_in: (B, D, W) incoming conv state.  Unused: in the prefill path the module
                only overwrites the cache (kept for signature fidelity).

    Returns:
      y:     (B, T, D)  silu(causal depthwise conv)
      cache: (B, D, W)  final conv state (last W inputs, zero left-padded).
    """
    # TODO(synk): decode (T == 1) step path that *reads* cache_in is not implemented.
    del cache_in
    B, T, D = x.shape
    W = weight.shape[-1]

    # Sublane quantum is dtype-aware (packed sub-32-bit dtypes tile sublanes in pairs/quads).
    itemsize = jnp.dtype(x.dtype).itemsize
    qt = {4: 8, 2: 16, 1: 32}.get(itemsize, 8)
    carry_rows = max(qt, _round_up(max(W - 1, 1), qt))

    # ---- T axis: pad to the sublane quantum so in-kernel rolls / carry slices stay aligned
    #      and a bounded divisor tile always exists (no huge full-extent blocks on odd T).
    T_pad = _round_up(T, qt)
    tT = _pick_tile(T_pad, max(tile_t, qt), qt)

    # ---- D axis (lanes): keep blocks lane-dense (multiples of 128) whenever possible.
    if D % 128 == 0:
        D_pad = D
    elif D <= max(tile_d, 128):
        D_pad = D                                 # single full-extent block (legal: equals array dim)
    else:
        D_pad = _round_up(D, 128)
    tD = D_pad if D_pad % 128 != 0 else _pick_tile(D_pad, max(tile_d, 128), 128)

    num_t = T_pad // tT
    if num_t > 1 and tT < carry_rows:
        raise ValueError(
            f"conv_size={W} needs a T tile of at least {carry_rows} rows when T is tiled "
            f"(got tT={tT}); raise tile_t.")

    w_taps = jnp.transpose(weight[:, 0, :], (1, 0))   # (W, D): tap index on sublanes, channel on lanes
    x_k = x
    if T_pad != T or D_pad != D:
        x_k = jnp.pad(x, ((0, 0), (0, T_pad - T), (0, D_pad - D)))
    if D_pad != D:
        w_taps = jnp.pad(w_taps, ((0, 0), (0, D_pad - D)))

    grid = (B, D_pad // tD, T_pad // tT)              # T last: sequential carried axis
    kernel = functools.partial(_short_conv_kernel, W=W, carry_rows=carry_rows)

    y = pl.pallas_call(
        kernel,
        out_shape=jax.ShapeDtypeStruct((B, T_pad, D_pad), x.dtype),
        grid_spec=pltpu.PrefetchScalarGridSpec(
            num_scalar_prefetch=0,
            grid=grid,
            in_specs=[
                pl.BlockSpec((pl.Squeezed(), tT, tD), lambda b, d, t: (b, t, d)),
                pl.BlockSpec((W, tD), lambda b, d, t: (0, d)),
            ],
            out_specs=pl.BlockSpec((pl.Squeezed(), tT, tD), lambda b, d, t: (b, t, d)),
            scratch_shapes=[pltpu.VMEM((carry_rows, tD), x.dtype)],
        ),
        compiler_params=pltpu.CompilerParams(
            dimension_semantics=("parallel", "parallel", "arbitrary"),
            vmem_limit_bytes=64 * 1024 * 1024),
    )(x_k, w_taps)

    if T_pad != T or D_pad != D:
        y = y[:, :T, :D]

    # Final conv state = last W input timesteps (zero left-padded), as (B, D, W).
    # A pure slice of x: cheaper in the wrapper than a masked lane-W store + transpose in-kernel.
    pad_t = max(W - T, 0)
    tail = x[:, max(T - W, 0):, :]
    if pad_t:
        tail = jnp.pad(tail, ((0, 0), (pad_t, 0), (0, 0)))
    cache = jnp.transpose(tail, (0, 2, 1)).astype(x.dtype)
    return y, cache


def _reference_forward(x, weight):
    """Pure-JAX reference of ShortConvolution prefill (causal depthwise conv + silu)."""
    B, T, D = x.shape
    W = weight.shape[-1]
    xp = jnp.pad(x, ((0, 0), (W - 1, 0), (0, 0)))
    y = jnp.zeros((B, T, D), jnp.float32)
    for w in range(W):
        y = y + weight[:, 0, w].astype(jnp.float32) * xp[:, w:w + T, :].astype(jnp.float32)
    y = jax.nn.silu(y).astype(x.dtype)
    cache = jnp.transpose(xp[:, T - 1:T - 1 + W, :], (0, 2, 1)).astype(x.dtype)
    return y, cache


if __name__ == "__main__":
    key = jax.random.PRNGKey(0)

    # 1) Small shapes consistent with the module: input_size=32, conv_size=4, tp_size=1.
    B, T, D, W = 2, 8, 32, 4
    kx, kw = jax.random.split(key)
    x = jax.random.normal(kx, (B, T, D), dtype=jnp.float32)
    weight = jax.random.normal(kw, (D, 1, W), dtype=jnp.float32) * 0.1
    cache_in = jnp.zeros((B, D, W), dtype=jnp.float32)

    y, cache = column_parallel_convolution(x, weight, cache_in)
    jax.block_until_ready((y, cache))
    y_ref, cache_ref = _reference_forward(x, weight)
    assert y.shape == (B, T, D) and cache.shape == (B, D, W)
    # silu uses EUP approx-reciprocal + one Newton step -> ~1e-6 rel err; 1e-4 is ample margin.
    assert jnp.allclose(y, y_ref, atol=1e-4, rtol=1e-4)
    assert jnp.allclose(cache, cache_ref, atol=1e-6, rtol=1e-6)

    # 2) Multi-tile (T and D tiled) roll + halo-carry path.
    B2, T2, D2 = 2, 64, 256
    kx2, kw2 = jax.random.split(jax.random.PRNGKey(1))
    x2 = jax.random.normal(kx2, (B2, T2, D2), dtype=jnp.float32)
    w2 = jax.random.normal(kw2, (D2, 1, W), dtype=jnp.float32) * 0.1
    y2, cache2 = column_parallel_convolution(x2, w2, None, tile_t=16, tile_d=128)
    jax.block_until_ready((y2, cache2))
    y2_ref, cache2_ref = _reference_forward(x2, w2)
    assert jnp.allclose(y2, y2_ref, atol=1e-4, rtol=1e-4)
    assert jnp.allclose(cache2, cache2_ref, atol=1e-6, rtol=1e-6)

    # 3) Non-multiple-of-8 T (padding path) with 8-row tiles (head-only per-tile path + carry).
    B3, T3, D3 = 1, 36, 128
    kx3, kw3 = jax.random.split(jax.random.PRNGKey(2))
    x3 = jax.random.normal(kx3, (B3, T3, D3), dtype=jnp.float32)
    w3 = jax.random.normal(kw3, (D3, 1, W), dtype=jnp.float32) * 0.1
    y3, cache3 = column_parallel_convolution(x3, w3, None, tile_t=8, tile_d=128)
    jax.block_until_ready((y3, cache3))
    y3_ref, cache3_ref = _reference_forward(x3, w3)
    assert jnp.allclose(y3, y3_ref, atol=1e-4, rtol=1e-4)
    assert jnp.allclose(cache3, cache3_ref, atol=1e-6, rtol=1e-6)

    print("KERNEL_OK")
</pallas_src>

<mosaic_0001>
module attributes {stable_mosaic.version = 11 : i64} {
  func.func @_short_conv_kernel(%arg0: i32, %arg1: i32, %arg2: i32, %arg3: memref<1x8x32xf32, #tpu.memory_space<vmem>>, %arg4: memref<4x32xf32, #tpu.memory_space<vmem>>, %arg5: memref<1x8x32xf32, #tpu.memory_space<vmem>>, %arg6: memref<8x32xf32, #tpu.memory_space<vmem>>) attributes {dimension_semantics = [#tpu.dimension_semantics<parallel>, #tpu.dimension_semantics<parallel>, #tpu.dimension_semantics<arbitrary>], iteration_bounds = array<i64: 2, 1, 1>, scalar_prefetch = 0 : i64, scratch_operands = 1 : i64, tpu.core_type = #tpu.core_type<tc>, window_params = [{transform_indices = @transform_0, window_bounds = array<i64: 1, 8, 32>}, {transform_indices = @transform_1, window_bounds = array<i64: 4, 32>}, {transform_indices = @transform_2, window_bounds = array<i64: 1, 8, 32>}]} {
    %c0_i32 = arith.constant 0 : i32
    %0 = arith.cmpi eq, %arg2, %c0_i32 : i32
    %1 = arith.extui %0 : i1 to i32
    %c0_i32_0 = arith.constant 0 : i32
    %2 = arith.cmpi ne, %1, %c0_i32_0 : i32
    scf.if %2 {
      %cst_20 = arith.constant 0.000000e+00 : f32
      %45 = vector.broadcast %cst_20 : f32 to vector<8x32xf32>
      %c0_21 = arith.constant 0 : index
      %c0_22 = arith.constant 0 : index
      %46 = vector.load %arg6[%c0_21, %c0_22] : memref<8x32xf32, #tpu.memory_space<vmem>>, vector<8x32xf32>
      tpu.vector_store %arg6[%c0_21, %c0_22], %45 {strides = array<i32>} : memref<8x32xf32, #tpu.memory_space<vmem>>, vector<8x32xf32>,
    } else {
    }
    %c0 = arith.constant 0 : index
    %c0_1 = arith.constant 0 : index
    %c0_2 = arith.constant 0 : index
    %3 = vector.load %arg3[%c0, %c0_1, %c0_2] : memref<1x8x32xf32, #tpu.memory_space<vmem>>, vector<1x8x32xf32>
    %4 = vector.shape_cast %3 : vector<1x8x32xf32> to vector<8x32xf32>
    %c0_3 = arith.constant 0 : index
    %c0_4 = arith.constant 0 : index
    %5 = vector.load %arg4[%c0_3, %c0_4] : memref<4x32xf32, #tpu.memory_space<vmem>>, vector<1x32xf32>
    %c1 = arith.constant 1 : index
    %c0_5 = arith.constant 0 : index
    %6 = vector.load %arg4[%c1, %c0_5] : memref<4x32xf32, #tpu.memory_space<vmem>>, vector<1x32xf32>
    %c2 = arith.constant 2 : index
    %c0_6 = arith.constant 0 : index
    %7 = vector.load %arg4[%c2, %c0_6] : memref<4x32xf32, #tpu.memory_space<vmem>>, vector<1x32xf32>
    %c3 = arith.constant 3 : index
    %c0_7 = arith.constant 0 : index
    %8 = vector.load %arg4[%c3, %c0_7] : memref<4x32xf32, #tpu.memory_space<vmem>>, vector<1x32xf32>
    %c5 = arith.constant 5 : index
    %c0_8 = arith.constant 0 : index
    %9 = vector.load %arg6[%c5, %c0_8] : memref<8x32xf32, #tpu.memory_space<vmem>>, vector<3x32xf32>
    %10 = tpu.concatenate %9, %4 in 0 : vector<3x32xf32>, vector<8x32xf32> -> vector<11x32xf32>
    %11 = vector.extract_strided_slice %10 {offsets = [0, 0], sizes = [8, 32], strides = [1, 1]} : vector<11x32xf32> to vector<8x32xf32>
    %12 = vector.broadcast %5 : vector<1x32xf32> to vector<8x32xf32>
    %13 = arith.mulf %12, %11 : vector<8x32xf32>
    %14 = vector.extract_strided_slice %10 {offsets = [1, 0], sizes = [8, 32], strides = [1, 1]} : vector<11x32xf32> to vector<8x32xf32>
    %15 = vector.broadcast %6 : vector<1x32xf32> to vector<8x32xf32>
    %16 = arith.mulf %15, %14 : vector<8x32xf32>
    %17 = arith.addf %13, %16 : vector<8x32xf32>
    %18 = vector.extract_strided_slice %10 {offsets = [2, 0], sizes = [8, 32], strides = [1, 1]} : vector<11x32xf32> to vector<8x32xf32>
    %19 = vector.broadcast %7 : vector<1x32xf32> to vector<8x32xf32>
    %20 = arith.mulf %19, %18 : vector<8x32xf32>
    %21 = arith.addf %17, %20 : vector<8x32xf32>
    %22 = vector.extract_strided_slice %10 {offsets = [3, 0], sizes = [8, 32], strides = [1, 1]} : vector<11x32xf32> to vector<8x32xf32>
    %23 = vector.broadcast %8 : vector<1x32xf32> to vector<8x32xf32>
    %24 = arith.mulf %23, %22 : vector<8x32xf32>
    %25 = arith.addf %21, %24 : vector<8x32xf32>
    %cst = arith.constant 0.000000e+00 : f32
    %26 = vector.broadcast %cst : f32 to vector<8x32xf32>
    %27 = arith.subf %26, %25 : vector<8x32xf32>
    %cst_9 = arith.constant 8.000000e+01 : f32
    %28 = vector.broadcast %cst_9 : f32 to vector<8x32xf32>
    %29 = arith.minimumf %27, %28 : vector<8x32xf32>
    %30 = math.exp %29 : vector<8x32xf32>
    %cst_10 = arith.constant 1.000000e+00 : f32
    %31 = vector.broadcast %cst_10 : f32 to vector<8x32xf32>
    %32 = arith.addf %31, %30 : vector<8x32xf32>
    %33 = tpu.reciprocal %32 {approx = true} : vector<8x32xf32> -> vector<8x32xf32>
    %34 = arith.mulf %32, %33 : vector<8x32xf32>
    %cst_11 = arith.constant 2.000000e+00 : f32
    %35 = vector.broadcast %cst_11 : f32 to vector<8x32xf32>
    %36 = arith.subf %35, %34 : vector<8x32xf32>
    %37 = arith.mulf %33, %36 : vector<8x32xf32>
    %38 = arith.mulf %25, %37 : vector<8x32xf32>
    %c0_12 = arith.constant 0 : index
    %c0_13 = arith.constant 0 : index
    %c0_14 = arith.constant 0 : index
    %39 = vector.load %arg5[%c0_12, %c0_13, %c0_14] : memref<1x8x32xf32, #tpu.memory_space<vmem>>, vector<1x8x32xf32>
    %40 = vector.shape_cast %39 : vector<1x8x32xf32> to vector<8x32xf32>
    %41 = vector.shape_cast %38 : vector<8x32xf32> to vector<1x8x32xf32>
    tpu.vector_store %arg5[%c0_12, %c0_13, %c0_14], %41 {strides = array<i32>} : memref<1x8x32xf32, #tpu.memory_space<vmem>>, vector<1x8x32xf32>,
    %c0_15 = arith.constant 0 : index
    %c0_16 = arith.constant 0 : index
    %c0_17 = arith.constant 0 : index
    %42 = vector.load %arg3[%c0_15, %c0_16, %c0_17] : memref<1x8x32xf32, #tpu.memory_space<vmem>>, vector<1x8x32xf32>
    %43 = vector.shape_cast %42 : vector<1x8x32xf32> to vector<8x32xf32>
    %c0_18 = arith.constant 0 : index
    %c0_19 = arith.constant 0 : index
    %44 = vector.load %arg6[%c0_18, %c0_19] : memref<8x32xf32, #tpu.memory_space<vmem>>, vector<8x32xf32>
    tpu.vector_store %arg6[%c0_18, %c0_19], %43 {strides = array<i32>} : memref<8x32xf32, #tpu.memory_space<vmem>>, vector<8x32xf32>,
    return
  }
  func.func @transform_0(%arg0: i32, %arg1: i32, %arg2: i32) -> (i32, i32, i32) {
    %c0_i32 = arith.constant 0 : i32
    return %arg0, %arg2, %arg1 : i32, i32, i32
  }
  func.func @transform_1(%arg0: i32, %arg1: i32, %arg2: i32) -> (i32, i32) {
    %c0_i32 = arith.constant 0 : i32
    %c0_i32_0 = arith.constant 0 : i32
    return %c0_i32, %arg1 : i32, i32
  }
  func.func @transform_2(%arg0: i32, %arg1: i32, %arg2: i32) -> (i32, i32, i32) {
    %c0_i32 = arith.constant 0 : i32
    return %arg0, %arg2, %arg1 : i32, i32, i32
  }
}

</mosaic_0001>

<llo_original>
// kernel: tpu_custom_call.1
$region0: #{tpu_custom_call.1}
  #allocation0 [shape = 'u32[]', space=smem, size = 0x4, offset = 0x4, fixed_abs, tag = 'smem constant byte address 0x4 - core index']
  #allocation1 [shape = 'u32[72,128]{1,0:T(1,128)}', space=vmem, size = 0x9000, scoped, tag = 'internal scratch']
  #allocation2 [shape = 'f32[8,32]{1,0:T(8,128)}', space=vmem, size = 0x1000, scoped, tag = 'scratch operand']
  %s0 = inlined_call_operand.hbm [shape: f32[2,8,32], index: 0, kind: input, shape index: {}]
  %s1 = inlined_call_operand.hbm [shape: f32[4,32], index: 1, kind: input, shape index: {}]
  %s2 = inlined_call_operand.hbm [shape: f32[2,8,32], index: 2, kind: output, shape index: {}]
  %s3 = sld [smem:[#allocation0]]
  $region53: #{tpu_custom_call.1} parent=0
    _
  %s5 = ssub.s32 1, %s3
  %s6 = scalar_select 0, %s5, %s3
  $region1: #{tpu_custom_call.1} parent=0
    #allocation3 [shape = 'u8[8192]{0}', space=vmem, size = 0x2000, scoped, tag = 'input window, operand 0']
    #allocation4 [shape = 's32[2]{0}', space=sflag, size = 0x8, scoped, tag = 'scoped memory for tpu_custom_call.1']
    #allocation5 [shape = 's32[2]{0}', space=sflag, size = 0x8, scoped, tag = 'scoped memory for tpu_custom_call.1']
    #allocation6 [shape = 'u8[2048]{0}', space=vmem, size = 0x800, scoped, tag = 'input window, operand 1, single buffered']
    #allocation7 [shape = 's32[1]{0}', space=sflag, size = 0x4, scoped, tag = 'scoped memory for tpu_custom_call.1']
    #allocation8 [shape = 'u8[8192]{0}', space=vmem, size = 0x2000, scoped, tag = 'output window, operand 0']
    %7 = vsyncpa [#allocation4], 0
    %s8 = scalar_lea.sflag [#allocation4], 1
    %9 = vsyncpa %s8, 0
    %10 = vsyncpa [#allocation7], 0
    %11 = vsyncpa [#allocation5], 0
    %s12 = scalar_lea.sflag [#allocation5], 1
    %13 = vsyncpa %s12, 0
    loop: start=0, step=1, limit=4
    $region2: #{tpu_custom_call.1} parent=1 // loop_pre_header
      _
    $region3: #{tpu_custom_call.1} parent=1 // loop_header
      %s15 = sphi 0, %s19
      %p16 = scmp.ge.s32.totalorder %s15, 4
      %s22 = sphi 0, %s41
      %s23 = sphi 0, %s37
      %s24 = sphi 0, %s33
      %s25 = sphi 0, %s22
      %s26 = sphi 0, %s23
      %s27 = sphi 0, %s24
      %s28 = sphi 0, %s25
      %s29 = sphi 0, %s26
      %s30 = sphi 0, %s27
      %s48 = sphi 0, %s50
      %s51 = sphi 0, %s48
      %s52 = sphi 0, %s51
      %s68 = sphi 0, %s52
      %s74 = sphi 0, %s76
      %s77 = sphi 0, %s74
      %s78 = sphi 0, %s77
      %s94 = sphi 0, %s78
      %s104 = sphi 0, %s106
      %s107 = sphi 0, %s104
      %s108 = sphi 0, %s107
      %s124 = sphi 0, %s108
    $region4: #{tpu_custom_call.1} parent=1 // loop_header_branch
      %18 = sbr.rel (%p16) target = $region8
    $region5: #{tpu_custom_call.1} parent=1 // loop_body
      %s20 = ssub.s32 %s15, 1
      %s21 = ssub.s32 %s15, 2
      %s31 = sadd.s32 1, %s24
      %p32 = scmp.ge.s32.totalorder %s31, 1
      %s33 = scalar_select %p32, 0, %s31
      %s34 = sadd.s32 1, %s23
      %s35 = scalar_select %p32, %s34, %s23
      %p36 = scmp.ge.s32.totalorder %s35, 1
      %s37 = scalar_select %p36, 0, %s35
      %s38 = sadd.s32 1, %s22
      %s39 = scalar_select %p36, %s38, %s22
      %p40 = scmp.ge.s32.totalorder %s39, 2
      %s41 = scalar_select %p40, 0, %s39
      %s42 = ssub.s32 %s22, %s41
      %s43 = ssub.s32 %s24, %s33
      %s44 = sor.u32 %s42, %s43
      %s45 = ssub.s32 %s23, %s37
      %s46 = sor.u32 %s44, %s45
      %p47 = scmp.eq.s32.totalorder %s46, 0
      %s49 = sadd.s32 %s48, 1
      %s50 = scalar_select %p47, %s48, %s49
      %p53 = pneg %p47
      %p54 = scmp.eq.s32.totalorder %s15, 1
      %p55 = por %p53, %p54
      %p56 = scmp.ne.s32.totalorder %s48, %s51
      %p57 = scmp.eq.s32.totalorder %s15, 0
      %p58 = por %p56, %p57
      %p59 = scmp.ne.s32.totalorder %s48, %s51
      %p60 = scmp.eq.s32.totalorder %s20, 1
      %p61 = por %p59, %p60
      %p62 = scmp.ne.s32.totalorder %s51, %s52
      %p63 = scmp.eq.s32.totalorder %s20, 0
      %p64 = por %p62, %p63
      %p65 = scmp.ne.s32.totalorder %s51, %s52
      %p66 = scmp.eq.s32.totalorder %s21, 1
      %p67 = por %p65, %p66
      %p69 = scmp.ne.s32.totalorder %s52, %s68
      %p70 = scmp.eq.s32.totalorder %s21, 0
      %p71 = por %p69, %p70
      %s72 = ssub.s32 %s23, %s37
      %p73 = scmp.eq.s32.totalorder %s72, 0
      %s75 = sadd.s32 %s74, 1
      %s76 = scalar_select %p73, %s74, %s75
      %p79 = pneg %p73
      %p80 = scmp.eq.s32.totalorder %s15, 1
      %p81 = por %p79, %p80
      %p82 = scmp.ne.s32.totalorder %s74, %s77
      %p83 = scmp.eq.s32.totalorder %s15, 0
      %p84 = por %p82, %p83
      %p85 = scmp.ne.s32.totalorder %s74, %s77
      %p86 = scmp.eq.s32.totalorder %s20, 1
      %p87 = por %p85, %p86
      %p88 = scmp.ne.s32.totalorder %s77, %s78
      %p89 = scmp.eq.s32.totalorder %s20, 0
      %p90 = por %p88, %p89
      %p91 = scmp.ne.s32.totalorder %s77, %s78
      %p92 = scmp.eq.s32.totalorder %s21, 1
      %p93 = por %p91, %p92
      %p95 = scmp.ne.s32.totalorder %s78, %s94
      %p96 = scmp.eq.s32.totalorder %s21, 0
      %p97 = por %p95, %p96
      %s98 = ssub.s32 %s22, %s41
      %s99 = ssub.s32 %s24, %s33
      %s100 = sor.u32 %s98, %s99
      %s101 = ssub.s32 %s23, %s37
      %s102 = sor.u32 %s100, %s101
      %p103 = scmp.eq.s32.totalorder %s102, 0
      %s105 = sadd.s32 %s104, 1
      %s106 = scalar_select %p103, %s104, %s105
      %p109 = pneg %p103
      %p110 = scmp.eq.s32.totalorder %s15, 1
      %p111 = por %p109, %p110
      %p112 = scmp.ne.s32.totalorder %s104, %s107
      %p113 = scmp.eq.s32.totalorder %s15, 0
      %p114 = por %p112, %p113
      %p115 = scmp.ne.s32.totalorder %s104, %s107
      %p116 = scmp.eq.s32.totalorder %s20, 1
      %p117 = por %p115, %p116
      %p118 = scmp.ne.s32.totalorder %s107, %s108
      %p119 = scmp.eq.s32.totalorder %s20, 0
      %p120 = por %p118, %p119
      %p121 = scmp.ne.s32.totalorder %s107, %s108
      %p122 = scmp.eq.s32.totalorder %s21, 1
      %p123 = por %p121, %p122
      %p125 = scmp.ne.s32.totalorder %s108, %s124
      %p126 = scmp.eq.s32.totalorder %s21, 0
      %p127 = por %p125, %p126
      %p128 = scmp.le.s32.totalorder 1, %s15
      %p129 = scmp.lt.s32.totalorder %s15, 3
      %p130 = pnand %p128, %p129
      %p131 = pneg %p130
      // Predicated region
      $region9: #{tpu_custom_call.1} parent=5 // pred_check
        _
      $region10: #{tpu_custom_call.1} parent=5 // pred_check_branch
        %133 = sbr.rel (%p130) target = $region12
      $region11: #{tpu_custom_call.1} parent=5 // pred_region
        %s134 = ssub.s32 %s15, 1
        // Predicated region
        $region13: #{tpu_custom_call.1} parent=11 // pred_check
          %p135 = pneg %p90
        $region14: #{tpu_custom_call.1} parent=11 // pred_check_branch
          %137 = sbr.rel (%p135) target = $region16
        $region15: #{tpu_custom_call.1} parent=11 // pred_region
          %139 = vsyncadd [#allocation7], 0
          %s140 = smul.addr %s26, 4
          %s141 = scalar_lea.hbm %s1, %s140
          %s143 = sshll.u32 %s141, 4
          %s144 = int_to_ptr.hbm [resolvable:$true] %s143
          %s145 = sshll.u32 [#allocation6], 4
          %s146 = int_to_ptr.vmem [resolvable:$true] %s145
          %148 = dma.hbm_to_vmem [thread:$0]  %s144, 64, %s146, [#allocation7]
        $region16: #{tpu_custom_call.1} parent=11 // pred_fallthru
          _
      $region12: #{tpu_custom_call.1} parent=5 // pred_fallthru
        _
      %p149 = scmp.lt.s32.totalorder %s15, 2
      // Predicated region
      $region17: #{tpu_custom_call.1} parent=5 // pred_check
        %p150 = pneg %p149
      $region18: #{tpu_custom_call.1} parent=5 // pred_check_branch
        %152 = sbr.rel (%p150) target = $region20
      $region19: #{tpu_custom_call.1} parent=5 // pred_region
        // Predicated region
        $region21: #{tpu_custom_call.1} parent=19 // pred_check
          %p153 = pneg %p58
        $region22: #{tpu_custom_call.1} parent=19 // pred_check_branch
          %155 = sbr.rel (%p153) target = $region24
        $region23: #{tpu_custom_call.1} parent=19 // pred_region
          %s156 = sand.u32 %s48, 1
          %s157 = scalar_lea.sflag [#allocation4], %s156
          %s158 = sand.u32 %s48, 1
          %s159 = smul.addr %s158, 8
          %s160 = scalar_lea.vmem [#allocation3], %s159
          %162 = vsyncadd %s157, 0
          %s163 = sadd.s32 %s23, %s24
          %s164 = sadd.s32 %s163, %s22
          %s165 = smul.addr %s164, 8
          %s166 = scalar_lea.hbm %s0, %s165
          %s168 = sshll.u32 %s166, 4
          %s169 = int_to_ptr.hbm [resolvable:$true] %s168
          %s170 = sshll.u32 %s160, 4
          %s171 = int_to_ptr.vmem [resolvable:$true] %s170
          %173 = dma.hbm_to_vmem [thread:$0]  %s169, 128, %s171, %s157
        $region24: #{tpu_custom_call.1} parent=19 // pred_fallthru
          _
      $region20: #{tpu_custom_call.1} parent=5 // pred_fallthru
        _
      %p174 = scmp.le.s32.totalorder 1, %s15
      %p175 = scmp.lt.s32.totalorder %s15, 3
      %p176 = pnand %p174, %p175
      %p177 = pneg %p176
      // Predicated region
      $region25: #{tpu_custom_call.1} parent=5 // pred_check
        _
      $region26: #{tpu_custom_call.1} parent=5 // pred_check_branch
        %179 = sbr.rel (%p176) target = $region28
      $region27: #{tpu_custom_call.1} parent=5 // pred_region
        %s180 = ssub.s32 %s15, 1
        %s181 = sand.u32 %s51, 1
        %s182 = scalar_lea.sflag [#allocation4], %s181
        %s183 = sand.u32 %s51, 1
        %s184 = smul.addr %s183, 8
        %s185 = scalar_lea.vmem [#allocation3], %s184
        // Predicated region
        $region29: #{tpu_custom_call.1} parent=27 // pred_check
          %p186 = pneg %p64
        $region30: #{tpu_custom_call.1} parent=27 // pred_check_branch
          %188 = sbr.rel (%p186) target = $region32
        $region31: #{tpu_custom_call.1} parent=27 // pred_region
          %190 = dma.done %s182, 128
        $region32: #{tpu_custom_call.1} parent=27 // pred_fallthru
          _
        // Predicated region
        $region33: #{tpu_custom_call.1} parent=27 // pred_check
          %p191 = pneg %p90
        $region34: #{tpu_custom_call.1} parent=27 // pred_check_branch
          %193 = sbr.rel (%p191) target = $region36
        $region35: #{tpu_custom_call.1} parent=27 // pred_region
          %195 = dma.done [#allocation7], 64
        $region36: #{tpu_custom_call.1} parent=27 // pred_fallthru
          _
        %s196 = sand.u32 %s51, 1
        %s197 = scalar_lea.sflag [#allocation4], %s196
        %s198 = sand.u32 %s51, 1
        %s199 = smul.addr %s198, 8
        %s200 = scalar_lea.vmem [#allocation3], %s199
        %p201 = pneg %p64
        %p202 = pneg %p61
        %p203 = pneg %p90
        %p204 = pneg %p87
        %p205 = pneg %p120
        %p206 = pneg %p117
        %s207 = sand.u32 %s107, 1
        %s208 = scalar_lea.sflag [#allocation5], %s207
        %s209 = sand.u32 %s107, 1
        %s210 = smul.addr %s209, 8
        %s211 = scalar_lea.vmem [#allocation8], %s210
        %p212 = scmp.eq.s32.totalorder %s27, 0
        // Predicated region
        $region37: #{tpu_custom_call.1} parent=27 // pred_check
          %p213 = pneg %p212
        $region38: #{tpu_custom_call.1} parent=27 // pred_check_branch
          %215 = sbr.rel (%p213) target = $region40
        $region39: #{tpu_custom_call.1} parent=27 // pred_region
          %vm216 = vcmask 261120
          %217 = vst.msk [vmem:[#allocation2] sm:$0xff] %vm216, 0.0
        $region40: #{tpu_custom_call.1} parent=27 // pred_fallthru
          _
        %v218 = vld [vmem:[%s185] sm:$0xff]
        %v219 = vld [vmem:[#allocation6] sm:$0x1]
        %v220 = vld [vmem:[#allocation6 + $0x1] sm:$0x1]
        %v221 = vld [vmem:[#allocation6 + $0x2] sm:$0x1]
        %v222 = vld [vmem:[#allocation6 + $0x3] sm:$0x1]
        %v223 = vld [vmem:[#allocation2 + $0x5] sm:$0x7]
        %v225 = vrot.slane %v218, 5
        %vm227 = vcmask 1042432
        %v228 = vsel %vm227, %v223, %v225
        %v229 = vperm.slane %v219, 0
        %v230 = vmul.f32 %v229, %v228
        %v231 = vperm.slane %v220, 0
        %v232 = vmul.f32 %v231, %v228
        %v233 = vmul.f32 %v231, %v225
        %vm236 = vcmask 1046528
        %v237 = vrot.slane %v232, 1
        %v238 = vrot.slane %v233, 1
        %v239 = vsel %vm236, %v237, %v238
        %v241 = vadd.f32 %v230, %v239
        %v242 = vperm.slane %v221, 0
        %v243 = vmul.f32 %v242, %v228
        %v244 = vmul.f32 %v242, %v225
        %vm247 = vcmask 1045504
        %v248 = vrot.slane %v243, 2
        %v249 = vrot.slane %v244, 2
        %v250 = vsel %vm247, %v248, %v249
        %v252 = vadd.f32 %v241, %v250
        %v253 = vperm.slane %v222, 0
        %v254 = vmul.f32 %v253, %v228
        %v255 = vmul.f32 %v253, %v225
        %vm258 = vcmask 1044480
        %v259 = vrot.slane %v254, 3
        %v260 = vrot.slane %v255, 3
        %v261 = vsel %vm258, %v259, %v260
        %v263 = vadd.f32 %v252, %v261
        %v264 = vsub.f32 0.0, %v263
        %v265 = vmin.f32 %v264, 80.0
        %v266 = vmul.f32 %v265, 1.442695
        %v267 = vpow.pop %v266
        %v268 = vadd.f32 %v267, 1.0
        %v269 = vrcp.pop %v268
        %v270 = vmul.f32 %v268, %v269
        %v271 = vsub.f32 2.0, %v270
        %v272 = vmul.f32 %v269, %v271
        %v273 = vmul.f32 %v263, %v272
        %vm274 = vcmask 261120
        %275 = vst.msk [vmem:[%s211] sm:$0xff] %vm274, %v273
        %v276 = vld [vmem:[%s185] sm:$0xff]
        %277 = vst.msk [vmem:[#allocation2] sm:$0xff] %vm274, %v276
        %s278 = sand.u32 %s107, 1
        %s279 = scalar_lea.sflag [#allocation5], %s278
        %s280 = sand.u32 %s107, 1
        %s281 = smul.addr %s280, 8
        %s282 = scalar_lea.vmem [#allocation8], %s281
        // Predicated region
        $region41: #{tpu_custom_call.1} parent=27 // pred_check
          %p283 = pneg %p117
        $region42: #{tpu_custom_call.1} parent=27 // pred_check_branch
          %285 = sbr.rel (%p283) target = $region44
        $region43: #{tpu_custom_call.1} parent=27 // pred_region
          %287 = vsyncadd %s279, 0
          %s288 = sadd.s32 %s26, %s27
          %s289 = sadd.s32 %s288, %s25
          %s290 = smul.addr %s289, 8
          %s291 = scalar_lea.hbm %s2, %s290
          %s293 = sshll.u32 %s282, 4
          %s294 = int_to_ptr.vmem [resolvable:$true] %s293
          %s295 = sshll.u32 %s291, 4
          %s296 = int_to_ptr.hbm [resolvable:$true] %s295
          %298 = dma.vmem_to_hbm [thread:$0]  %s294, 128, %s296, %s279
        $region44: #{tpu_custom_call.1} parent=27 // pred_fallthru
          _
      $region28: #{tpu_custom_call.1} parent=5 // pred_fallthru
        _
      %p299 = scmp.le.s32.totalorder 2, %s15
      // Predicated region
      $region45: #{tpu_custom_call.1} parent=5 // pred_check
        %p300 = pneg %p299
      $region46: #{tpu_custom_call.1} parent=5 // pred_check_branch
        %302 = sbr.rel (%p300) target = $region48
      $region47: #{tpu_custom_call.1} parent=5 // pred_region
        %s303 = ssub.s32 %s15, 2
        // Predicated region
        $region49: #{tpu_custom_call.1} parent=47 // pred_check
          %p304 = pneg %p123
        $region50: #{tpu_custom_call.1} parent=47 // pred_check_branch
          %306 = sbr.rel (%p304) target = $region52
        $region51: #{tpu_custom_call.1} parent=47 // pred_region
          %s307 = sand.u32 %s108, 1
          %s308 = scalar_lea.sflag [#allocation5], %s307
          %s309 = sand.u32 %s108, 1
          %s310 = smul.addr %s309, 8
          %s311 = scalar_lea.vmem [#allocation8], %s310
          %313 = dma.done %s308, 128
        $region52: #{tpu_custom_call.1} parent=47 // pred_fallthru
          _
      $region48: #{tpu_custom_call.1} parent=5 // pred_fallthru
        _
    $region6: #{tpu_custom_call.1} parent=1 // loop_footer
      %s19 = sadd.s32 1, %s15
    $region7: #{tpu_custom_call.1} parent=1 // loop_footer_branch
      %14 = sbr.rel target = $region3
    $region8: #{tpu_custom_call.1} parent=1 // loop_exit
      _
    %314 = vsyncpa [#allocation4], 1
    %s315 = scalar_lea.sflag [#allocation4], 1
    %316 = vsyncpa %s315, 1
    %317 = vsyncpa [#allocation7], 1
    %318 = vsyncpa [#allocation5], 1
    %s319 = scalar_lea.sflag [#allocation5], 1
    %320 = vsyncpa %s319, 1

</llo_original>
